<compile_context>
chip_gen: v7x
topology: tpu7x:2x2x1
jax: 0.10.0
libtpu: 0.0.40
codegen_flags: <defaults>
</compile_context>

<pallas_src>
import jax
import jax.numpy as jnp
from jax.experimental import pallas as pl
from jax.experimental.pallas import tpu as pltpu


def _round_up(v, m):
    return ((v + m - 1) // m) * m


def make_vcnet_kernel(acts, compute_dtype):
    """Builds a kernel closed over the list of per-layer activations."""
    n_layers = len(acts)

    def kernel(*refs):
        # refs layout (all activations are (features, TILE_B), batch on lanes):
        #   [0]        t      : (1, TILE_B)              VMEM  f32
        #   [1]        x_T    : (D0p, TILE_B)            VMEM  compute_dtype
        #   [2:2+2L]   (W_T_i, b_i) pairs                VMEM  W_T:(Dout_p, Din_p) cdtype
        #                                                       b  :(Dout_p, 1)    f32
        #   [2+2L]     w_last : (Dh_p, 1)                VMEM  f32  (= linear1.weight[:,1:].T col)
        #   [3+2L]     scalars: (2,)                     SMEM  [w_t, b_last]
        #   [4+2L]     q_out  : (1, TILE_B)              VMEM  f32
        t_ref = refs[0]
        x_ref = refs[1]
        layer_refs = refs[2:2 + 2 * n_layers]
        w_last_ref = refs[2 + 2 * n_layers]
        sc_ref = refs[3 + 2 * n_layers]
        q_ref = refs[4 + 2 * n_layers]

        h = x_ref[...]                                    # (Din_p, TILE_B)
        for i, act in enumerate(acts):
            w = layer_refs[2 * i][...]                    # (Dout_p, Din_p)
            b = layer_refs[2 * i + 1][...]                # (Dout_p, 1)
            z = jnp.dot(w, h, preferred_element_type=jnp.float32) + b
            if act == 'relu':
                z = jnp.maximum(z, 0.0)
            elif act == 'tanh':
                z = jnp.tanh(z)
            elif act == 'sigmoid':
                z = jax.nn.sigmoid(z)
            # else: no activation
            # Feed the next matmul in compute dtype; keep the last layer in f32
            # for the epilogue (activation / epilogue math stays f32 -> v5e safe).
            h = z.astype(compute_dtype) if i + 1 < n_layers else z

        # Final Dh->1 projection on the VPU (+ sublane reduce) instead of an
        # N=1 MXU matmul: q[b] = sum_f h[f,b] * w_last[f].
        q = jnp.sum(h * w_last_ref[...], axis=0, keepdims=True)      # (1, TILE_B)

        # Q = [t, hidden] @ W_linear1.T + b_linear1   (concat avoided exactly)
        q_ref[...] = q + t_ref[...] * sc_ref[0] + sc_ref[1]

    return kernel


def vcnet_forward(t, x, params, *, tile_b=512, compute_dtype=jnp.float32):
    """Returns (g, Q) exactly like Vcnet.forward: g is None, Q is (B, 1)."""
    density = params['density']        # list of (W(in,out), b(out,))  (PyTorch W.T)
    acts = params['acts']              # list of activation names
    w_lin1 = params['w_lin1']          # (1 + Dh, 1)  == linear1.weight.T
    b_lin1 = params['b_lin1']          # () scalar

    B, D0 = x.shape
    B_pad = pl.cdiv(B, tile_b) * tile_b
    D0p = _round_up(D0, 16)

    # Lane-dense, batch-on-lanes layouts (pad batch / feature dims with zeros).
    x_T = jnp.zeros((D0p, B_pad), dtype=compute_dtype)
    x_T = x_T.at[:D0, :B].set(x.astype(compute_dtype).T)
    t_row = jnp.zeros((1, B_pad), dtype=jnp.float32)
    t_row = t_row.at[0, :B].set(t.reshape(-1).astype(jnp.float32))

    inputs = [t_row, x_T]
    in_specs = [pl.BlockSpec((1, tile_b), lambda i: (0, i)),
                pl.BlockSpec((D0p, tile_b), lambda i: (0, i))]

    for (W, b) in density:
        din, dout = W.shape
        din_p, dout_p = _round_up(din, 16), _round_up(dout, 16)
        Wt = jnp.zeros((dout_p, din_p), dtype=jnp.float32)
        Wt = Wt.at[:dout, :din].set(W.astype(jnp.float32).T).astype(compute_dtype)
        bcol = jnp.zeros((dout_p, 1), dtype=jnp.float32)
        bcol = bcol.at[:dout, 0].set(b.astype(jnp.float32))
        inputs += [Wt, bcol]
        in_specs += [pl.BlockSpec(Wt.shape, lambda i: (0, 0)),     # resident weight
                     pl.BlockSpec(bcol.shape, lambda i: (0, 0))]   # resident bias

    dh_real = density[-1][0].shape[1]
    dh_p = _round_up(dh_real, 16)
    w_last = jnp.zeros((dh_p, 1), dtype=jnp.float32)
    w_last = w_last.at[:dh_real, 0].set(w_lin1[1:, 0].astype(jnp.float32))
    inputs.append(w_last)
    in_specs.append(pl.BlockSpec(w_last.shape, lambda i: (0, 0)))

    scalars = jnp.array([w_lin1[0, 0], b_lin1], dtype=jnp.float32)   # [w_t, bias]
    inputs.append(scalars)
    in_specs.append(pl.BlockSpec(memory_space=pltpu.MemorySpace.SMEM))

    q_row = pl.pallas_call(
        make_vcnet_kernel(acts, compute_dtype),
        grid=(B_pad // tile_b,),
        out_shape=jax.ShapeDtypeStruct((1, B_pad), jnp.float32),
        in_specs=in_specs,
        out_specs=pl.BlockSpec((1, tile_b), lambda i: (0, i)),
        compiler_params=pltpu.CompilerParams(dimension_semantics=("parallel",)),
    )(*inputs)

    g = None
    Q = q_row[0, :B].reshape(B, 1)
    return g, Q


def vcnet_forward_reference(t, x, params):
    """Pure-JAX f32 reference mirroring the PyTorch forward (for verification)."""
    h = x.astype(jnp.float32)
    for (W, b), act in zip(params['density'], params['acts']):
        h = h @ W.astype(jnp.float32) + b.astype(jnp.float32)
        if act == 'relu':
            h = jnp.maximum(h, 0.0)
        elif act == 'tanh':
            h = jnp.tanh(h)
        elif act == 'sigmoid':
            h = jax.nn.sigmoid(h)
    t_hidden = jnp.concatenate([t.reshape(-1, 1), h], axis=1)   # (B, 1 + Dh)
    return t_hidden @ params['w_lin1'] + params['b_lin1']


if __name__ == "__main__":
    key = jax.random.PRNGKey(0)

    # cfg_density: last hidden dim must be 200 because linear1 is hardcoded to
    # in_features=201 ( = 1 treatment column + 200 hidden features ).
    cfg_density = [(6, 32, 1, 'relu'), (32, 200, 1, 'relu')]
    D_in = cfg_density[0][0]

    keys = jax.random.split(key, 3 + 2 * len(cfg_density))
    ki = 0
    density, acts = [], []
    for (ind, outd, isbias, act) in cfg_density:
        W = 0.05 * jax.random.normal(keys[ki], (ind, outd), dtype=jnp.float32); ki += 1
        if isbias:
            b = 0.05 * jax.random.normal(keys[ki], (outd,), dtype=jnp.float32)
        else:
            b = jnp.zeros((outd,), dtype=jnp.float32)
        ki += 1
        density.append((W, b))
        acts.append(act)

    w_lin1 = 0.05 * jax.random.normal(keys[ki], (201, 1), dtype=jnp.float32); ki += 1
    b_lin1 = jnp.float32(0.1)
    params = {'density': density, 'acts': acts, 'w_lin1': w_lin1, 'b_lin1': b_lin1}

    # --- Test 1: tiny batch, f32 path (tight tolerance) --------------------
    B1 = 8
    t1 = jax.random.uniform(keys[ki], (B1,), dtype=jnp.float32)
    x1 = jax.random.normal(keys[ki + 1], (B1, D_in), dtype=jnp.float32)
    g, Q1 = vcnet_forward(t1, x1, params, tile_b=256, compute_dtype=jnp.float32)
    Q1 = jax.block_until_ready(Q1)
    Q1_ref = vcnet_forward_reference(t1, x1, params)
    assert g is None
    assert Q1.shape == (B1, 1)
    assert jnp.allclose(Q1, Q1_ref, atol=1e-5, rtol=1e-5)

    # --- Test 2: multi-tile batch, bf16 matmul inputs (f32 accumulate) -----
    B2 = 777
    t2 = jax.random.uniform(keys[ki], (B2,), dtype=jnp.float32)
    x2 = jax.random.normal(keys[ki + 1], (B2, D_in), dtype=jnp.float32)
    _, Q2 = vcnet_forward(t2, x2, params, tile_b=256, compute_dtype=jnp.bfloat16)
    Q2 = jax.block_until_ready(Q2)
    Q2_ref = vcnet_forward_reference(t2, x2, params)
    assert Q2.shape == (B2, 1)
    assert jnp.allclose(Q2, Q2_ref, atol=1e-2, rtol=1e-2)

    # TODO(synk): Density_Block / Dynamic_FC / Truncated_power (the Q-head) are
    # constructed in Vcnet.__init__ but never invoked by Vcnet.forward (g=None),
    # so they are intentionally not translated into the kernel.

    print("KERNEL_OK")
</pallas_src>

<mosaic_0001>
module attributes {stable_mosaic.version = 11 : i64} {
  func.func @kernel(%arg0: i32, %arg1: memref<1x256xf32, #tpu.memory_space<vmem>>, %arg2: memref<16x256xf32, #tpu.memory_space<vmem>>, %arg3: memref<32x16xf32, #tpu.memory_space<vmem>>, %arg4: memref<32x1xf32, #tpu.memory_space<vmem>>, %arg5: memref<208x32xf32, #tpu.memory_space<vmem>>, %arg6: memref<208x1xf32, #tpu.memory_space<vmem>>, %arg7: memref<208x1xf32, #tpu.memory_space<vmem>>, %arg8: memref<2xf32, #tpu.memory_space<smem>>, %arg9: memref<1x256xf32, #tpu.memory_space<vmem>>) attributes {dimension_semantics = [#tpu.dimension_semantics<parallel>], iteration_bounds = array<i64: 1>, scalar_prefetch = 0 : i64, scratch_operands = 0 : i64, tpu.core_type = #tpu.core_type<tc>, window_params = [{transform_indices = @transform_0, window_bounds = array<i64: 1, 256>}, {transform_indices = @transform_1, window_bounds = array<i64: 16, 256>}, {pipeline_mode = #tpu.pipeline_mode<synchronous>, transform_indices = @transform_2, window_bounds = array<i64: 32, 16>}, {pipeline_mode = #tpu.pipeline_mode<synchronous>, transform_indices = @transform_3, window_bounds = array<i64: 32, 1>}, {pipeline_mode = #tpu.pipeline_mode<synchronous>, transform_indices = @transform_4, window_bounds = array<i64: 208, 32>}, {pipeline_mode = #tpu.pipeline_mode<synchronous>, transform_indices = @transform_5, window_bounds = array<i64: 208, 1>}, {pipeline_mode = #tpu.pipeline_mode<synchronous>, transform_indices = @transform_6, window_bounds = array<i64: 208, 1>}, {transform_indices = @transform_7, window_bounds = array<i64: 2>}, {transform_indices = @transform_8, window_bounds = array<i64: 1, 256>}]} {
    %c0 = arith.constant 0 : index
    %c0_0 = arith.constant 0 : index
    %0 = vector.load %arg2[%c0, %c0_0] : memref<16x256xf32, #tpu.memory_space<vmem>>, vector<16x256xf32>
    %c0_1 = arith.constant 0 : index
    %c0_2 = arith.constant 0 : index
    %1 = vector.load %arg3[%c0_1, %c0_2] : memref<32x16xf32, #tpu.memory_space<vmem>>, vector<32x16xf32>
    %c0_3 = arith.constant 0 : index
    %c0_4 = arith.constant 0 : index
    %2 = vector.load %arg4[%c0_3, %c0_4] : memref<32x1xf32, #tpu.memory_space<vmem>>, vector<32x1xf32>
    %cst = arith.constant dense<0.000000e+00> : vector<32x256xf32>
    %3 = tpu.matmul %1, %0, %cst {dimension_numbers = #tpu.dot_dimension_numbers<[1], [0], [0], [1], [0, 0, 1, 1], [], []>} : vector<32x16xf32>, vector<16x256xf32>, vector<32x256xf32> -> vector<32x256xf32>
    %4 = vector.broadcast %2 : vector<32x1xf32> to vector<32x256xf32>
    %5 = arith.addf %3, %4 : vector<32x256xf32>
    %cst_5 = arith.constant 0.000000e+00 : f32
    %6 = vector.broadcast %cst_5 : f32 to vector<32x256xf32>
    %7 = arith.maximumf %5, %6 : vector<32x256xf32>
    %c0_6 = arith.constant 0 : index
    %c0_7 = arith.constant 0 : index
    %8 = vector.load %arg5[%c0_6, %c0_7] : memref<208x32xf32, #tpu.memory_space<vmem>>, vector<208x32xf32>
    %c0_8 = arith.constant 0 : index
    %c0_9 = arith.constant 0 : index
    %9 = vector.load %arg6[%c0_8, %c0_9] : memref<208x1xf32, #tpu.memory_space<vmem>>, vector<208x1xf32>
    %cst_10 = arith.constant dense<0.000000e+00> : vector<208x256xf32>
    %10 = tpu.matmul %8, %7, %cst_10 {dimension_numbers = #tpu.dot_dimension_numbers<[1], [0], [0], [1], [0, 0, 1, 1], [], []>} : vector<208x32xf32>, vector<32x256xf32>, vector<208x256xf32> -> vector<208x256xf32>
    %11 = vector.broadcast %9 : vector<208x1xf32> to vector<208x256xf32>
    %12 = arith.addf %10, %11 : vector<208x256xf32>
    %cst_11 = arith.constant 0.000000e+00 : f32
    %13 = vector.broadcast %cst_11 : f32 to vector<208x256xf32>
    %14 = arith.maximumf %12, %13 : vector<208x256xf32>
    %c0_12 = arith.constant 0 : index
    %c0_13 = arith.constant 0 : index
    %15 = vector.load %arg7[%c0_12, %c0_13] : memref<208x1xf32, #tpu.memory_space<vmem>>, vector<208x1xf32>
    %16 = vector.broadcast %15 : vector<208x1xf32> to vector<208x256xf32>
    %17 = arith.mulf %14, %16 : vector<208x256xf32>
    %cst_14 = arith.constant dense<0.000000e+00> : vector<256xf32>
    %18 = vector.multi_reduction <add>, %17, %cst_14 [0] : vector<208x256xf32> to vector<256xf32>
    %19 = vector.shape_cast %18 : vector<256xf32> to vector<1x256xf32>
    %c0_15 = arith.constant 0 : index
    %c0_16 = arith.constant 0 : index
    %20 = vector.load %arg1[%c0_15, %c0_16] : memref<1x256xf32, #tpu.memory_space<vmem>>, vector<1x256xf32>
    %c0_17 = arith.constant 0 : index
    %21 = memref.load %arg8[%c0_17] : memref<2xf32, #tpu.memory_space<smem>>
    %22 = vector.broadcast %21 : f32 to vector<1x256xf32>
    %23 = arith.mulf %20, %22 : vector<1x256xf32>
    %24 = arith.addf %19, %23 : vector<1x256xf32>
    %c1 = arith.constant 1 : index
    %25 = memref.load %arg8[%c1] : memref<2xf32, #tpu.memory_space<smem>>
    %26 = vector.broadcast %25 : f32 to vector<1x256xf32>
    %27 = arith.addf %24, %26 : vector<1x256xf32>
    %c0_18 = arith.constant 0 : index
    %c0_19 = arith.constant 0 : index
    %28 = vector.load %arg9[%c0_18, %c0_19] : memref<1x256xf32, #tpu.memory_space<vmem>>, vector<1x256xf32>
    tpu.vector_store %arg9[%c0_18, %c0_19], %27 {strides = array<i32>} : memref<1x256xf32, #tpu.memory_space<vmem>>, vector<1x256xf32>,
    return
  }
  func.func @transform_0(%arg0: i32) -> (i32, i32) {
    %c0_i32 = arith.constant 0 : i32
    %c0_i32_0 = arith.constant 0 : i32
    return %c0_i32, %arg0 : i32, i32
  }
  func.func @transform_1(%arg0: i32) -> (i32, i32) {
    %c0_i32 = arith.constant 0 : i32
    %c0_i32_0 = arith.constant 0 : i32
    return %c0_i32, %arg0 : i32, i32
  }
  func.func @transform_2(%arg0: i32) -> (i32, i32) {
    %c0_i32 = arith.constant 0 : i32
    %c0_i32_0 = arith.constant 0 : i32
    %c0_i32_1 = arith.constant 0 : i32
    return %c0_i32, %c0_i32_0 : i32, i32
  }
  func.func @transform_3(%arg0: i32) -> (i32, i32) {
    %c0_i32 = arith.constant 0 : i32
    %c0_i32_0 = arith.constant 0 : i32
    %c0_i32_1 = arith.constant 0 : i32
    return %c0_i32, %c0_i32_0 : i32, i32
  }
  func.func @transform_4(%arg0: i32) -> (i32, i32) {
    %c0_i32 = arith.constant 0 : i32
    %c0_i32_0 = arith.constant 0 : i32
    %c0_i32_1 = arith.constant 0 : i32
    return %c0_i32, %c0_i32_0 : i32, i32
  }
  func.func @transform_5(%arg0: i32) -> (i32, i32) {
    %c0_i32 = arith.constant 0 : i32
    %c0_i32_0 = arith.constant 0 : i32
    %c0_i32_1 = arith.constant 0 : i32
    return %c0_i32, %c0_i32_0 : i32, i32
  }
  func.func @transform_6(%arg0: i32) -> (i32, i32) {
    %c0_i32 = arith.constant 0 : i32
    %c0_i32_0 = arith.constant 0 : i32
    %c0_i32_1 = arith.constant 0 : i32
    return %c0_i32, %c0_i32_0 : i32, i32
  }
  func.func @transform_7(%arg0: i32) -> i32 {
    %c0_i32 = arith.constant 0 : i32
    %c0_i32_0 = arith.constant 0 : i32
    return %c0_i32 : i32
  }
  func.func @transform_8(%arg0: i32) -> (i32, i32) {
    %c0_i32 = arith.constant 0 : i32
    %c0_i32_0 = arith.constant 0 : i32
    return %c0_i32, %arg0 : i32, i32
  }
}

</mosaic_0001>

<llo_original>
// kernel: tpu_custom_call.1
$region0: #{tpu_custom_call.1}
  #allocation0 [shape = 'u32[]', space=smem, size = 0x4, offset = 0x4, fixed_abs, tag = 'smem constant byte address 0x4 - core index']
  #allocation1 [shape = 'u32[144,128]{1,0:T(1,128)}', space=vmem, size = 0x12000, scoped, tag = 'internal scratch']
  %s0 = inlined_call_operand.vmem [shape: f32[1,256], index: 0, kind: input, shape index: {}]
  %s1 = inlined_call_operand.vmem [shape: f32[16,256], index: 1, kind: input, shape index: {}]
  %s2 = inlined_call_operand.vmem [shape: f32[32,16], index: 2, kind: input, shape index: {}]
  %s3 = inlined_call_operand.vmem [shape: f32[32,1], index: 3, kind: input, shape index: {}]
  %s4 = inlined_call_operand.vmem [shape: f32[208,32], index: 4, kind: input, shape index: {}]
  %s5 = inlined_call_operand.vmem [shape: f32[208,1], index: 5, kind: input, shape index: {}]
  %s6 = inlined_call_operand.vmem [shape: f32[208,1], index: 6, kind: input, shape index: {}]
  %s7 = inlined_call_operand.vmem [shape: f32[2], index: 7, kind: input, shape index: {}]
  %s8 = inlined_call_operand.hbm [shape: f32[1,256], index: 8, kind: output, shape index: {}]
  %s9 = sld [smem:[#allocation0]]
  $region46: #{tpu_custom_call.1} parent=0
    _
  %s11 = ssub.s32 1, %s9
  %s12 = scalar_select 0, %s11, %s9
  $region1: #{tpu_custom_call.1} parent=0
    #allocation2 [shape = 'u8[512]{0}', space=smem, size = 0x200, scoped, tag = 'input window, operand 7, single buffered']
    #allocation3 [shape = 's32[1]{0}', space=sflag, size = 0x4, scoped, tag = 'scoped memory for tpu_custom_call.1']
    #allocation4 [shape = 's32[1]{0}', space=sflag, size = 0x4, scoped, tag = 'scoped memory for tpu_custom_call.1']
    #allocation5 [shape = 'u8[1024]{0}', space=vmem, size = 0x400, scoped, tag = 'output window, operand 0, single buffered']
    %13 = vsyncpa [#allocation4], 0
    %14 = vsyncpa [#allocation3], 0
    // Predicated region
    $region2: #{tpu_custom_call.1} parent=1 // pred_check
      _
    $region3: #{tpu_custom_call.1} parent=1 // pred_check_branch
      %16 = sbr.rel (0) target = $region5
    $region4: #{tpu_custom_call.1} parent=1 // pred_region
      _
    $region5: #{tpu_custom_call.1} parent=1 // pred_fallthru
      _
    // Predicated region
    $region6: #{tpu_custom_call.1} parent=1 // pred_check
      _
    $region7: #{tpu_custom_call.1} parent=1 // pred_check_branch
      %18 = sbr.rel (0) target = $region9
    $region8: #{tpu_custom_call.1} parent=1 // pred_region
      _
    $region9: #{tpu_custom_call.1} parent=1 // pred_fallthru
      _
    // Predicated region
    $region10: #{tpu_custom_call.1} parent=1 // pred_check
      _
    $region11: #{tpu_custom_call.1} parent=1 // pred_check_branch
      %20 = sbr.rel (0) target = $region13
    $region12: #{tpu_custom_call.1} parent=1 // pred_region
      _
    $region13: #{tpu_custom_call.1} parent=1 // pred_fallthru
      _
    // Predicated region
    $region14: #{tpu_custom_call.1} parent=1 // pred_check
      _
    $region15: #{tpu_custom_call.1} parent=1 // pred_check_branch
      %22 = sbr.rel (0) target = $region17
    $region16: #{tpu_custom_call.1} parent=1 // pred_region
      _
    $region17: #{tpu_custom_call.1} parent=1 // pred_fallthru
      _
    // Predicated region
    $region18: #{tpu_custom_call.1} parent=1 // pred_check
      _
    $region19: #{tpu_custom_call.1} parent=1 // pred_check_branch
      %24 = sbr.rel (0) target = $region21
    $region20: #{tpu_custom_call.1} parent=1 // pred_region
      _
    $region21: #{tpu_custom_call.1} parent=1 // pred_fallthru
      _
    // Predicated region
    $region22: #{tpu_custom_call.1} parent=1 // pred_check
      _
    $region23: #{tpu_custom_call.1} parent=1 // pred_check_branch
      %26 = sbr.rel (0) target = $region25
    $region24: #{tpu_custom_call.1} parent=1 // pred_region
      _
    $region25: #{tpu_custom_call.1} parent=1 // pred_fallthru
      _
    // Predicated region
    $region26: #{tpu_custom_call.1} parent=1 // pred_check
      _
    $region27: #{tpu_custom_call.1} parent=1 // pred_check_branch
      %28 = sbr.rel (0) target = $region29
    $region28: #{tpu_custom_call.1} parent=1 // pred_region
      _
    $region29: #{tpu_custom_call.1} parent=1 // pred_fallthru
      _
    // Predicated region
    $region30: #{tpu_custom_call.1} parent=1 // pred_check
      _
    $region31: #{tpu_custom_call.1} parent=1 // pred_check_branch
      %30 = sbr.rel (0) target = $region33
    $region32: #{tpu_custom_call.1} parent=1 // pred_region
      %s32 = ssub.s32 16, 16
      %33 = vsyncadd [#allocation4], %s32
      %s35 = sshll.u32 %s7, 4
      %s36 = int_to_ptr.vmem [resolvable:$true] %s35
      %38 = dma.vmem_to_smem %s36, 16, [#allocation2], [#allocation4]
    $region33: #{tpu_custom_call.1} parent=1 // pred_fallthru
      _
    // Predicated region
    $region34: #{tpu_custom_call.1} parent=1 // pred_check
      _
    $region35: #{tpu_custom_call.1} parent=1 // pred_check_branch
      %40 = sbr.rel (0) target = $region37
    $region36: #{tpu_custom_call.1} parent=1 // pred_region
      %41 = dma.done [#allocation4], 16
    $region37: #{tpu_custom_call.1} parent=1 // pred_fallthru
      _
    %42 = sfence
    %v43 = vld [vmem:[%s1] sm:$0xff]
    %v44 = vld [vmem:[%s1 + $0x8] sm:$0xff]
    %v45 = vld [vmem:[%s1 + $0x10] sm:$0xff]
    %v46 = vld [vmem:[%s1 + $0x18] sm:$0xff]
    %v47 = vld [vmem:[%s2] sm:$0xff]
    %v48 = vld [vmem:[%s2 + $0x8] sm:$0xff]
    %v49 = vld [vmem:[%s2 + $0x10] sm:$0xff]
    %v50 = vld [vmem:[%s2 + $0x18] sm:$0xff]
    %v51 = vld [vmem:[%s3] sm:$0xff]
    %v52 = vld [vmem:[%s3 + $0x8] sm:$0xff]
    %v53 = vld [vmem:[%s3 + $0x10] sm:$0xff]
    %v54 = vld [vmem:[%s3 + $0x18] sm:$0xff]
    %56 = vset.pattern.permute.xlu0 0
    %57 = vperm.xlu0 %56, %v51
    %v58 = vpop.permute.xlu0 %57
    %61 = vset.pattern.permute.xlu0 0
    %62 = vperm.xlu0 %61, %v52
    %v63 = vpop.permute.xlu0 %62
    %66 = vset.pattern.permute.xlu0 0
    %67 = vperm.xlu0 %66, %v53
    %v68 = vpop.permute.xlu0 %67
    %71 = vset.pattern.permute.xlu0 0
    %72 = vperm.xlu0 %71, %v54
    %v73 = vpop.permute.xlu0 %72
    %vm75 = vcmask 130048
    %v77 = vsel %vm75, %v47, 0
    %v80 = vsel %vm75, %v48, 0
    %v83 = vsel %vm75, %v49, 0
    %v86 = vsel %vm75, %v50, 0
    %88 = vmatprep.subr.mxu0 %v44
    %89 = vmatpush1.msra.mxu0 %v43
    %90 = vmatprep.subr.mxu0 %v46
    %91 = vmatpush1.msra.mxu0 %v45
    %92 = vmatprep.subr.mxu0 0.0
    %93 = vmatpush1.msra.mxu0 0.0
    %94 = vmatprep.subr.mxu0 0.0
    %95 = vmatpush1.msra.mxu0 0.0
    %96 = vmatprep.subr.mxu0 0.0
    %97 = vmatpush1.msra.mxu0 0.0
    %98 = vmatprep.subr.mxu0 0.0
    %99 = vmatpush1.msra.mxu0 0.0
    %100 = vmatprep.subr.mxu0 0.0
    %101 = vmatpush1.msra.mxu0 0.0
    %102 = vmatprep.subr.mxu0 0.0
    %103 = vmatpush1.msra.mxu0 0.0
    %104 = vmatprep.subr.mxu0 0.0
    %105 = vmatpush1.msra.mxu0 0.0
    %106 = vmatprep.subr.mxu0 0.0
    %107 = vmatpush1.msra.mxu0 0.0
    %108 = vmatprep.subr.mxu0 0.0
    %109 = vmatpush1.msra.mxu0 0.0
    %110 = vmatprep.subr.mxu0 0.0
    %111 = vmatpush1.msra.mxu0 0.0
    %112 = vmatprep.subr.mxu0 0.0
    %113 = vmatpush1.msra.mxu0 0.0
    %114 = vmatprep.subr.mxu0 0.0
    %115 = vmatpush1.msra.mxu0 0.0
    %116 = vmatprep.subr.mxu0 0.0
    %117 = vmatpush1.msra.mxu0 0.0
    %118 = vmatprep.subr.mxu0 0.0
    %119 = vmatpush1.msra.mxu0 0.0
    %120 = vmatprep.subr.mxu0 0.0
    %121 = vmatpush1.msra.mxu0 0.0
    %122 = vmatprep.subr.mxu0 0.0
    %123 = vmatpush1.msra.mxu0 0.0
    %124 = vmatprep.subr.mxu0 0.0
    %125 = vmatpush1.msra.mxu0 0.0
    %126 = vmatprep.subr.mxu0 0.0
    %127 = vmatpush1.msra.mxu0 0.0
    %128 = vmatprep.subr.mxu0 0.0
    %129 = vmatpush1.msra.mxu0 0.0
    %130 = vmatprep.subr.mxu0 0.0
    %131 = vmatpush1.msra.mxu0 0.0
    %132 = vmatprep.subr.mxu0 0.0
    %133 = vmatpush1.msra.mxu0 0.0
    %134 = vmatprep.subr.mxu0 0.0
    %135 = vmatpush1.msra.mxu0 0.0
    %136 = vmatprep.subr.mxu0 0.0
    %137 = vmatpush1.msra.mxu0 0.0
    %138 = vmatprep.subr.mxu0 0.0
    %139 = vmatpush1.msra.mxu0 0.0
    %140 = vmatprep.subr.mxu0 0.0
    %141 = vmatpush1.msra.mxu0 0.0
    %142 = vmatprep.subr.mxu0 0.0
    %143 = vmatpush1.msra.mxu0 0.0
    %144 = vmatprep.subr.mxu0 0.0
    %145 = vmatpush1.msra.mxu0 0.0
    %146 = vmatprep.subr.mxu0 0.0
    %147 = vmatpush1.msra.mxu0 0.0
    %148 = vmatprep.subr.mxu0 0.0
    %149 = vmatpush1.msra.mxu0 0.0
    %150 = vmatprep.subr.mxu0 0.0
    %151 = vmatpush1.msra.mxu0 0.0
    %152 = vmatprep.mubr.f32.mxu0 0.0
    %153 = vmatmul.mubr.f32.gmra.mrb[0].mxu0 %v77
    %v154 = vpop.f32.mrb[0].mxu0
    %v155 = vadd.f32 %v58, %v154
    %v156 = vpop.f32.mrb[0].mxu0
    %v157 = vadd.f32 %v58, %v156
    %158 = vmatprep.mubr.f32.mxu0 0.0
    %159 = vmatmul.mubr.f32.gmra.mrb[0].mxu0 %v80
    %v160 = vpop.f32.mrb[0].mxu0
    %v161 = vadd.f32 %v63, %v160
    %v162 = vpop.f32.mrb[0].mxu0
    %v163 = vadd.f32 %v63, %v162
    %164 = vmatprep.mubr.f32.mxu0 0.0
    %165 = vmatmul.mubr.f32.gmra.mrb[0].mxu0 %v83
    %v166 = vpop.f32.mrb[0].mxu0
    %v167 = vadd.f32 %v68, %v166
    %v168 = vpop.f32.mrb[0].mxu0
    %v169 = vadd.f32 %v68, %v168
    %170 = vmatprep.mubr.f32.mxu0 0.0
    %171 = vmatmul.mubr.f32.gmra.mrb[0].mxu0 %v86
    %v172 = vpop.f32.mrb[0].mxu0
    %v173 = vadd.f32 %v73, %v172
    %v174 = vpop.f32.mrb[0].mxu0
    %v175 = vadd.f32 %v73, %v174
    %176 = vdwg.mxu0
    %v177 = vmax.f32 %v155, 0.0
    %v178 = vmax.f32 %v157, 0.0
    %v179 = vmax.f32 %v161, 0.0
    %v180 = vmax.f32 %v163, 0.0
    %v181 = vmax.f32 %v167, 0.0
    %v182 = vmax.f32 %v169, 0.0
    %v183 = vmax.f32 %v173, 0.0
    %v184 = vmax.f32 %v175, 0.0
    %v185 = vld [vmem:[%s4] sm:$0xff]
    %v186 = vld [vmem:[%s4 + $0x8] sm:$0xff]
    %v187 = vld [vmem:[%s4 + $0x10] sm:$0xff]
    %v188 = vld [vmem:[%s4 + $0x18] sm:$0xff]
    %v189 = vld [vmem:[%s4 + $0x20] sm:$0xff]
    %v190 = vld [vmem:[%s4 + $0x28] sm:$0xff]
    %v191 = vld [vmem:[%s4 + $0x30] sm:$0xff]
    %v192 = vld [vmem:[%s4 + $0x38] sm:$0xff]
    %v193 = vld [vmem:[%s4 + $0x40] sm:$0xff]
    %v194 = vld [vmem:[%s4 + $0x48] sm:$0xff]
    %v195 = vld [vmem:[%s4 + $0x50] sm:$0xff]
    %v196 = vld [vmem:[%s4 + $0x58] sm:$0xff]
    %v197 = vld [vmem:[%s4 + $0x60] sm:$0xff]
    %v198 = vld [vmem:[%s4 + $0x68] sm:$0xff]
    %v199 = vld [vmem:[%s4 + $0x70] sm:$0xff]
    %v200 = vld [vmem:[%s4 + $0x78] sm:$0xff]
    %v201 = vld [vmem:[%s4 + $0x80] sm:$0xff]
    %v202 = vld [vmem:[%s4 + $0x88] sm:$0xff]
    %v203 = vld [vmem:[%s4 + $0x90] sm:$0xff]
    %v204 = vld [vmem:[%s4 + $0x98] sm:$0xff]
    %v205 = vld [vmem:[%s4 + $0xa0] sm:$0xff]
    %v206 = vld [vmem:[%s4 + $0xa8] sm:$0xff]
    %v207 = vld [vmem:[%s4 + $0xb0] sm:$0xff]
    %v208 = vld [vmem:[%s4 + $0xb8] sm:$0xff]
    %v209 = vld [vmem:[%s4 + $0xc0] sm:$0xff]
    %v210 = vld [vmem:[%s4 + $0xc8] sm:$0xff]
    %v211 = vld [vmem:[%s5] sm:$0xff]
    %v212 = vld [vmem:[%s5 + $0x8] sm:$0xff]
    %v213 = vld [vmem:[%s5 + $0x10] sm:$0xff]
    %v214 = vld [vmem:[%s5 + $0x18] sm:$0xff]
    %v215 = vld [vmem:[%s5 + $0x20] sm:$0xff]
    %v216 = vld [vmem:[%s5 + $0x28] sm:$0xff]
    %v217 = vld [vmem:[%s5 + $0x30] sm:$0xff]
    %v218 = vld [vmem:[%s5 + $0x38] sm:$0xff]
    %v219 = vld [vmem:[%s5 + $0x40] sm:$0xff]
    %v220 = vld [vmem:[%s5 + $0x48] sm:$0xff]
    %v221 = vld [vmem:[%s5 + $0x50] sm:$0xff]
    %v222 = vld [vmem:[%s5 + $0x58] sm:$0xff]
    %v223 = vld [vmem:[%s5 + $0x60] sm:$0xff]
    %v224 = vld [vmem:[%s5 + $0x68] sm:$0xff]
    %v225 = vld [vmem:[%s5 + $0x70] sm:$0xff]
    %v226 = vld [vmem:[%s5 + $0x78] sm:$0xff]
    %v227 = vld [vmem:[%s5 + $0x80] sm:$0xff]
    %v228 = vld [vmem:[%s5 + $0x88] sm:$0xff]
    %v229 = vld [vmem:[%s5 + $0x90] sm:$0xff]
    %v230 = vld [vmem:[%s5 + $0x98] sm:$0xff]
    %v231 = vld [vmem:[%s5 + $0xa0] sm:$0xff]
    %v232 = vld [vmem:[%s5 + $0xa8] sm:$0xff]
    %v233 = vld [vmem:[%s5 + $0xb0] sm:$0xff]
    %v234 = vld [vmem:[%s5 + $0xb8] sm:$0xff]
    %v235 = vld [vmem:[%s5 + $0xc0] sm:$0xff]
    %v236 = vld [vmem:[%s5 + $0xc8] sm:$0xff]
    %238 = vset.pattern.permute.xlu0 0
    %239 = vperm.xlu0 %238, %v211
    %v240 = vpop.permute.xlu0 %239
    %243 = vset.pattern.permute.xlu0 0
    %244 = vperm.xlu0 %243, %v212
    %v245 = vpop.permute.xlu0 %244
    %248 = vset.pattern.permute.xlu0 0
    %249 = vperm.xlu0 %248, %v213
    %v250 = vpop.permute.xlu0 %249
    %253 = vset.pattern.permute.xlu0 0
    %254 = vperm.xlu0 %253, %v214
    %v255 = vpop.permute.xlu0 %254
    %258 = vset.pattern.permute.xlu0 0
    %259 = vperm.xlu0 %258, %v215
    %v260 = vpop.permute.xlu0 %259
    %263 = vset.pattern.permute.xlu0 0
    %264 = vperm.xlu0 %263, %v216
    %v265 = vpop.permute.xlu0 %264
    %268 = vset.pattern.permute.xlu0 0
    %269 = vperm.xlu0 %268, %v217
    %v270 = vpop.permute.xlu0 %269
    %273 = vset.pattern.permute.xlu0 0
    %274 = vperm.xlu0 %273, %v218
    %v275 = vpop.permute.xlu0 %274
    %278 = vset.pattern.permute.xlu0 0
    %279 = vperm.xlu0 %278, %v219
    %v280 = vpop.permute.xlu0 %279
    %283 = vset.pattern.permute.xlu0 0
    %284 = vperm.xlu0 %283, %v220
    %v285 = vpop.permute.xlu0 %284
    %288 = vset.pattern.permute.xlu0 0
    %289 = vperm.xlu0 %288, %v221
    %v290 = vpop.permute.xlu0 %289
    %293 = vset.pattern.permute.xlu0 0
    %294 = vperm.xlu0 %293, %v222
    %v295 = vpop.permute.xlu0 %294
    %298 = vset.pattern.permute.xlu0 0
    %299 = vperm.xlu0 %298, %v223
    %v300 = vpop.permute.xlu0 %299
    %303 = vset.pattern.permute.xlu0 0
    %304 = vperm.xlu0 %303, %v224
    %v305 = vpop.permute.xlu0 %304
    %308 = vset.pattern.permute.xlu0 0
    %309 = vperm.xlu0 %308, %v225
    %v310 = vpop.permute.xlu0 %309
    %313 = vset.pattern.permute.xlu0 0
    %314 = vperm.xlu0 %313, %v226
    %v315 = vpop.permute.xlu0 %314
    %318 = vset.pattern.permute.xlu0 0
    %319 = vperm.xlu0 %318, %v227
    %v320 = vpop.permute.xlu0 %319
    %323 = vset.pattern.permute.xlu0 0
    %324 = vperm.xlu0 %323, %v228
    %v325 = vpop.permute.xlu0 %324
    %328 = vset.pattern.permute.xlu0 0
    %329 = vperm.xlu0 %328, %v229
    %v330 = vpop.permute.xlu0 %329
    %333 = vset.pattern.permute.xlu0 0
    %334 = vperm.xlu0 %333, %v230
    %v335 = vpop.permute.xlu0 %334
    %338 = vset.pattern.permute.xlu0 0
    %339 = vperm.xlu0 %338, %v231
    %v340 = vpop.permute.xlu0 %339
    %343 = vset.pattern.permute.xlu0 0
    %344 = vperm.xlu0 %343, %v232
    %v345 = vpop.permute.xlu0 %344
    %348 = vset.pattern.permute.xlu0 0
    %349 = vperm.xlu0 %348, %v233
    %v350 = vpop.permute.xlu0 %349
    %353 = vset.pattern.permute.xlu0 0
    %354 = vperm.xlu0 %353, %v234
    %v355 = vpop.permute.xlu0 %354
    %358 = vset.pattern.permute.xlu0 0
    %359 = vperm.xlu0 %358, %v235
    %v360 = vpop.permute.xlu0 %359
    %363 = vset.pattern.permute.xlu0 0
    %364 = vperm.xlu0 %363, %v236
    %v365 = vpop.permute.xlu0 %364
    %vm367 = vcmask 261120
    %v369 = vsel %vm367, %v185, 0
    %v372 = vsel %vm367, %v186, 0
    %v375 = vsel %vm367, %v187, 0
    %v378 = vsel %vm367, %v188, 0
    %v381 = vsel %vm367, %v189, 0
    %v384 = vsel %vm367, %v190, 0
    %v387 = vsel %vm367, %v191, 0
    %v390 = vsel %vm367, %v192, 0
    %v393 = vsel %vm367, %v193, 0
    %v396 = vsel %vm367, %v194, 0
    %v399 = vsel %vm367, %v195, 0
    %v402 = vsel %vm367, %v196, 0
    %v405 = vsel %vm367, %v197, 0
    %v408 = vsel %vm367, %v198, 0
    %v411 = vsel %vm367, %v199, 0
    %v414 = vsel %vm367, %v200, 0
    %v417 = vsel %vm367, %v201, 0
    %v420 = vsel %vm367, %v202, 0
    %v423 = vsel %vm367, %v203, 0
    %v426 = vsel %vm367, %v204, 0
    %v429 = vsel %vm367, %v205, 0
    %v432 = vsel %vm367, %v206, 0
    %v435 = vsel %vm367, %v207, 0
    %v438 = vsel %vm367, %v208, 0
    %v441 = vsel %vm367, %v209, 0
    %v444 = vsel %vm367, %v210, 0
    %446 = vmatprep.subr.mxu0 %v178
    %447 = vmatpush1.msra.mxu0 %v177
    %448 = vmatprep.subr.mxu0 %v180
    %449 = vmatpush1.msra.mxu0 %v179
    %450 = vmatprep.subr.mxu0 %v182
    %451 = vmatpush1.msra.mxu0 %v181
    %452 = vmatprep.subr.mxu0 %v184
    %453 = vmatpush1.msra.mxu0 %v183
    %454 = vmatprep.subr.mxu0 0.0
    %455 = vmatpush1.msra.mxu0 0.0
    %456 = vmatprep.subr.mxu0 0.0
    %457 = vmatpush1.msra.mxu0 0.0
    %458 = vmatprep.subr.mxu0 0.0
    %459 = vmatpush1.msra.mxu0 0.0
    %460 = vmatprep.subr.mxu0 0.0
    %461 = vmatpush1.msra.mxu0 0.0
    %462 = vmatprep.subr.mxu0 0.0
    %463 = vmatpush1.msra.mxu0 0.0
    %464 = vmatprep.subr.mxu0 0.0
    %465 = vmatpush1.msra.mxu0 0.0
    %466 = vmatprep.subr.mxu0 0.0
    %467 = vmatpush1.msra.mxu0 0.0
    %468 = vmatprep.subr.mxu0 0.0
    %469 = vmatpush1.msra.mxu0 0.0
    %470 = vmatprep.subr.mxu0 0.0
    %471 = vmatpush1.msra.mxu0 0.0
    %472 = vmatprep.subr.mxu0 0.0
    %473 = vmatpush1.msra.mxu0 0.0
    %474 = vmatprep.subr.mxu0 0.0
    %475 = vmatpush1.msra.mxu0 0.0
    %476 = vmatprep.subr.mxu0 0.0
    %477 = vmatpush1.msra.mxu0 0.0
    %478 = vmatprep.subr.mxu0 0.0
    %479 = vmatpush1.msra.mxu0 0.0
    %480 = vmatprep.subr.mxu0 0.0
    %481 = vmatpush1.msra.mxu0 0.0
    %482 = vmatprep.subr.mxu0 0.0
    %483 = vmatpush1.msra.mxu0 0.0
    %484 = vmatprep.subr.mxu0 0.0
    %485 = vmatpush1.msra.mxu0 0.0
    %486 = vmatprep.subr.mxu0 0.0
    %487 = vmatpush1.msra.mxu0 0.0
    %488 = vmatprep.subr.mxu0 0.0
    %489 = vmatpush1.msra.mxu0 0.0
    %490 = vmatprep.subr.mxu0 0.0
    %491 = vmatpush1.msra.mxu0 0.0
    %492 = vmatprep.subr.mxu0 0.0
    %493 = vmatpush1.msra.mxu0 0.0
    %494 = vmatprep.subr.mxu0 0.0
    %495 = vmatpush1.msra.mxu0 0.0
    %496 = vmatprep.subr.mxu0 0.0
    %497 = vmatpush1.msra.mxu0 0.0
    %498 = vmatprep.subr.mxu0 0.0
    %499 = vmatpush1.msra.mxu0 0.0
    %500 = vmatprep.subr.mxu0 0.0
    %501 = vmatpush1.msra.mxu0 0.0
    %502 = vmatprep.subr.mxu0 0.0
    %503 = vmatpush1.msra.mxu0 0.0
    %504 = vmatprep.subr.mxu0 0.0
    %505 = vmatpush1.msra.mxu0 0.0
    %506 = vmatprep.subr.mxu0 0.0
    %507 = vmatpush1.msra.mxu0 0.0
    %508 = vmatprep.subr.mxu0 0.0
    %509 = vmatpush1.msra.mxu0 0.0
    %510 = vmatprep.mubr.f32.mxu0 0.0
    %511 = vmatmul.mubr.f32.gmra.mrb[0].mxu0 %v369
    %v512 = vpop.f32.mrb[0].mxu0
    %v513 = vadd.f32 %v240, %v512
    %v514 = vpop.f32.mrb[0].mxu0
    %v515 = vadd.f32 %v240, %v514
    %516 = vmatprep.mubr.f32.mxu0 0.0
    %517 = vmatmul.mubr.f32.gmra.mrb[0].mxu0 %v372
    %v518 = vpop.f32.mrb[0].mxu0
    %v519 = vadd.f32 %v245, %v518
    %v520 = vpop.f32.mrb[0].mxu0
    %v521 = vadd.f32 %v245, %v520
    %522 = vmatprep.mubr.f32.mxu0 0.0
    %523 = vmatmul.mubr.f32.gmra.mrb[0].mxu0 %v375
    %v524 = vpop.f32.mrb[0].mxu0
    %v525 = vadd.f32 %v250, %v524
    %v526 = vpop.f32.mrb[0].mxu0
    %v527 = vadd.f32 %v250, %v526
    %528 = vmatprep.mubr.f32.mxu0 0.0
    %529 = vmatmul.mubr.f32.gmra.mrb[0].mxu0 %v378
    %v530 = vpop.f32.mrb[0].mxu0
    %v531 = vadd.f32 %v255, %v530
    %v532 = vpop.f32.mrb[0].mxu0
    %v533 = vadd.f32 %v255, %v532
    %534 = vmatprep.mubr.f32.mxu0 0.0
    %535 = vmatmul.mubr.f32.gmra.mrb[0].mxu0 %v381
    %v536 = vpop.f32.mrb[0].mxu0
    %v537 = vadd.f32 %v260, %v536
    %v538 = vpop.f32.mrb[0].mxu0
    %v539 = vadd.f32 %v260, %v538
    %540 = vmatprep.mubr.f32.mxu0 0.0
    %541 = vmatmul.mubr.f32.gmra.mrb[0].mxu0 %v384
    %v542 = vpop.f32.mrb[0].mxu0
    %v543 = vadd.f32 %v265, %v542
    %v544 = vpop.f32.mrb[0].mxu0
    %v545 = vadd.f32 %v265, %v544
    %546 = vmatprep.mubr.f32.mxu0 0.0
    %547 = vmatmul.mubr.f32.gmra.mrb[0].mxu0 %v387
    %v548 = vpop.f32.mrb[0].mxu0
    %v549 = vadd.f32 %v270, %v548
    %v550 = vpop.f32.mrb[0].mxu0
    %v551 = vadd.f32 %v270, %v550
    %552 = vmatprep.mubr.f32.mxu0 0.0
    %553 = vmatmul.mubr.f32.gmra.mrb[0].mxu0 %v390
    %v554 = vpop.f32.mrb[0].mxu0
    %v555 = vadd.f32 %v275, %v554
    %v556 = vpop.f32.mrb[0].mxu0
    %v557 = vadd.f32 %v275, %v556
    %558 = vmatprep.mubr.f32.mxu0 0.0
    %559 = vmatmul.mubr.f32.gmra.mrb[0].mxu0 %v393
    %v560 = vpop.f32.mrb[0].mxu0
    %v561 = vadd.f32 %v280, %v560
    %v562 = vpop.f32.mrb[0].mxu0
    %v563 = vadd.f32 %v280, %v562
    %564 = vmatprep.mubr.f32.mxu0 0.0
    %565 = vmatmul.mubr.f32.gmra.mrb[0].mxu0 %v396
    %v566 = vpop.f32.mrb[0].mxu0
    %v567 = vadd.f32 %v285, %v566
    %v568 = vpop.f32.mrb[0].mxu0
    %v569 = vadd.f32 %v285, %v568
    %570 = vmatprep.mubr.f32.mxu0 0.0
    %571 = vmatmul.mubr.f32.gmra.mrb[0].mxu0 %v399
    %v572 = vpop.f32.mrb[0].mxu0
    %v573 = vadd.f32 %v290, %v572
    %v574 = vpop.f32.mrb[0].mxu0
    %v575 = vadd.f32 %v290, %v574
    %576 = vmatprep.mubr.f32.mxu0 0.0
    %577 = vmatmul.mubr.f32.gmra.mrb[0].mxu0 %v402
    %v578 = vpop.f32.mrb[0].mxu0
    %v579 = vadd.f32 %v295, %v578
    %v580 = vpop.f32.mrb[0].mxu0
    %v581 = vadd.f32 %v295, %v580
    %582 = vmatprep.mubr.f32.mxu0 0.0
    %583 = vmatmul.mubr.f32.gmra.mrb[0].mxu0 %v405
    %v584 = vpop.f32.mrb[0].mxu0
    %v585 = vadd.f32 %v300, %v584
    %v586 = vpop.f32.mrb[0].mxu0
    %v587 = vadd.f32 %v300, %v586
    %588 = vmatprep.mubr.f32.mxu0 0.0
    %589 = vmatmul.mubr.f32.gmra.mrb[0].mxu0 %v408
    %v590 = vpop.f32.mrb[0].mxu0
    %v591 = vadd.f32 %v305, %v590
    %v592 = vpop.f32.mrb[0].mxu0
    %v593 = vadd.f32 %v305, %v592
    %594 = vmatprep.mubr.f32.mxu0 0.0
    %595 = vmatmul.mubr.f32.gmra.mrb[0].mxu0 %v411
    %v596 = vpop.f32.mrb[0].mxu0
    %v597 = vadd.f32 %v310, %v596
    %v598 = vpop.f32.mrb[0].mxu0
    %v599 = vadd.f32 %v310, %v598
    %600 = vmatprep.mubr.f32.mxu0 0.0
    %601 = vmatmul.mubr.f32.gmra.mrb[0].mxu0 %v414
    %v602 = vpop.f32.mrb[0].mxu0
    %v603 = vadd.f32 %v315, %v602
    %v604 = vpop.f32.mrb[0].mxu0
    %v605 = vadd.f32 %v315, %v604
    %606 = vmatprep.mubr.f32.mxu0 0.0
    %607 = vmatmul.mubr.f32.gmra.mrb[0].mxu0 %v417
    %v608 = vpop.f32.mrb[0].mxu0
    %v609 = vadd.f32 %v320, %v608
    %v610 = vpop.f32.mrb[0].mxu0
    %v611 = vadd.f32 %v320, %v610
    %612 = vmatprep.mubr.f32.mxu0 0.0
    %613 = vmatmul.mubr.f32.gmra.mrb[0].mxu0 %v420
    %v614 = vpop.f32.mrb[0].mxu0
    %v615 = vadd.f32 %v325, %v614
    %v616 = vpop.f32.mrb[0].mxu0
    %v617 = vadd.f32 %v325, %v616
    %618 = vmatprep.mubr.f32.mxu0 0.0
    %619 = vmatmul.mubr.f32.gmra.mrb[0].mxu0 %v423
    %v620 = vpop.f32.mrb[0].mxu0
    %v621 = vadd.f32 %v330, %v620
    %v622 = vpop.f32.mrb[0].mxu0
    %v623 = vadd.f32 %v330, %v622
    %624 = vmatprep.mubr.f32.mxu0 0.0
    %625 = vmatmul.mubr.f32.gmra.mrb[0].mxu0 %v426
    %v626 = vpop.f32.mrb[0].mxu0
    %v627 = vadd.f32 %v335, %v626
    %v628 = vpop.f32.mrb[0].mxu0
    %v629 = vadd.f32 %v335, %v628
    %630 = vmatprep.mubr.f32.mxu0 0.0
    %631 = vmatmul.mubr.f32.gmra.mrb[0].mxu0 %v429
    %v632 = vpop.f32.mrb[0].mxu0
    %v633 = vadd.f32 %v340, %v632
    %v634 = vpop.f32.mrb[0].mxu0
    %v635 = vadd.f32 %v340, %v634
    %636 = vmatprep.mubr.f32.mxu0 0.0
    %637 = vmatmul.mubr.f32.gmra.mrb[0].mxu0 %v432
    %v638 = vpop.f32.mrb[0].mxu0
    %v639 = vadd.f32 %v345, %v638
    %v640 = vpop.f32.mrb[0].mxu0
    %v641 = vadd.f32 %v345, %v640
    %642 = vmatprep.mubr.f32.mxu0 0.0
    %643 = vmatmul.mubr.f32.gmra.mrb[0].mxu0 %v435
    %v644 = vpop.f32.mrb[0].mxu0
    %v645 = vadd.f32 %v350, %v644
    %v646 = vpop.f32.mrb[0].mxu0
    %v647 = vadd.f32 %v350, %v646
    %648 = vmatprep.mubr.f32.mxu0 0.0
    %649 = vmatmul.mubr.f32.gmra.mrb[0].mxu0 %v438
    %v650 = vpop.f32.mrb[0].mxu0
    %v651 = vadd.f32 %v355, %v650
    %v652 = vpop.f32.mrb[0].mxu0
    %v653 = vadd.f32 %v355, %v652
    %654 = vmatprep.mubr.f32.mxu0 0.0
    %655 = vmatmul.mubr.f32.gmra.mrb[0].mxu0 %v441
    %v656 = vpop.f32.mrb[0].mxu0
    %v657 = vadd.f32 %v360, %v656
    %v658 = vpop.f32.mrb[0].mxu0
    %v659 = vadd.f32 %v360, %v658
    %660 = vmatprep.mubr.f32.mxu0 0.0
    %661 = vmatmul.mubr.f32.gmra.mrb[0].mxu0 %v444
    %v662 = vpop.f32.mrb[0].mxu0
    %v663 = vadd.f32 %v365, %v662
    %v664 = vpop.f32.mrb[0].mxu0
    %v665 = vadd.f32 %v365, %v664
    %666 = vdwg.mxu0
    %v667 = vmax.f32 %v513, 0.0
    %v668 = vmax.f32 %v515, 0.0
    %v669 = vmax.f32 %v519, 0.0
    %v670 = vmax.f32 %v521, 0.0
    %v671 = vmax.f32 %v525, 0.0
    %v672 = vmax.f32 %v527, 0.0
    %v673 = vmax.f32 %v531, 0.0
    %v674 = vmax.f32 %v533, 0.0
    %v675 = vmax.f32 %v537, 0.0
    %v676 = vmax.f32 %v539, 0.0
    %v677 = vmax.f32 %v543, 0.0
    %v678 = vmax.f32 %v545, 0.0
    %v679 = vmax.f32 %v549, 0.0
    %v680 = vmax.f32 %v551, 0.0
    %v681 = vmax.f32 %v555, 0.0
    %v682 = vmax.f32 %v557, 0.0
    %v683 = vmax.f32 %v561, 0.0
    %v684 = vmax.f32 %v563, 0.0
    %v685 = vmax.f32 %v567, 0.0
    %v686 = vmax.f32 %v569, 0.0
    %v687 = vmax.f32 %v573, 0.0
    %v688 = vmax.f32 %v575, 0.0
    %v689 = vmax.f32 %v579, 0.0
    %v690 = vmax.f32 %v581, 0.0
    %v691 = vmax.f32 %v585, 0.0
    %v692 = vmax.f32 %v587, 0.0
    %v693 = vmax.f32 %v591, 0.0
    %v694 = vmax.f32 %v593, 0.0
    %v695 = vmax.f32 %v597, 0.0
    %v696 = vmax.f32 %v599, 0.0
    %v697 = vmax.f32 %v603, 0.0
    %v698 = vmax.f32 %v605, 0.0
    %v699 = vmax.f32 %v609, 0.0
    %v700 = vmax.f32 %v611, 0.0
    %v701 = vmax.f32 %v615, 0.0
    %v702 = vmax.f32 %v617, 0.0
    %v703 = vmax.f32 %v621, 0.0
    %v704 = vmax.f32 %v623, 0.0
    %v705 = vmax.f32 %v627, 0.0
    %v706 = vmax.f32 %v629, 0.0
    %v707 = vmax.f32 %v633, 0.0
    %v708 = vmax.f32 %v635, 0.0
    %v709 = vmax.f32 %v639, 0.0
    %v710 = vmax.f32 %v641, 0.0
    %v711 = vmax.f32 %v645, 0.0
    %v712 = vmax.f32 %v647, 0.0
    %v713 = vmax.f32 %v651, 0.0
    %v714 = vmax.f32 %v653, 0.0
    %v715 = vmax.f32 %v657, 0.0
    %v716 = vmax.f32 %v659, 0.0
    %v717 = vmax.f32 %v663, 0.0
    %v718 = vmax.f32 %v665, 0.0
    %v719 = vld [vmem:[%s6] sm:$0xff]
    %v720 = vld [vmem:[%s6 + $0x8] sm:$0xff]
    %v721 = vld [vmem:[%s6 + $0x10] sm:$0xff]
    %v722 = vld [vmem:[%s6 + $0x18] sm:$0xff]
    %v723 = vld [vmem:[%s6 + $0x20] sm:$0xff]
    %v724 = vld [vmem:[%s6 + $0x28] sm:$0xff]
    %v725 = vld [vmem:[%s6 + $0x30] sm:$0xff]
    %v726 = vld [vmem:[%s6 + $0x38] sm:$0xff]
    %v727 = vld [vmem:[%s6 + $0x40] sm:$0xff]
    %v728 = vld [vmem:[%s6 + $0x48] sm:$0xff]
    %v729 = vld [vmem:[%s6 + $0x50] sm:$0xff]
    %v730 = vld [vmem:[%s6 + $0x58] sm:$0xff]
    %v731 = vld [vmem:[%s6 + $0x60] sm:$0xff]
    %v732 = vld [vmem:[%s6 + $0x68] sm:$0xff]
    %v733 = vld [vmem:[%s6 + $0x70] sm:$0xff]
    %v734 = vld [vmem:[%s6 + $0x78] sm:$0xff]
    %v735 = vld [vmem:[%s6 + $0x80] sm:$0xff]
    %v736 = vld [vmem:[%s6 + $0x88] sm:$0xff]
    %v737 = vld [vmem:[%s6 + $0x90] sm:$0xff]
    %v738 = vld [vmem:[%s6 + $0x98] sm:$0xff]
    %v739 = vld [vmem:[%s6 + $0xa0] sm:$0xff]
    %v740 = vld [vmem:[%s6 + $0xa8] sm:$0xff]
    %v741 = vld [vmem:[%s6 + $0xb0] sm:$0xff]
    %v742 = vld [vmem:[%s6 + $0xb8] sm:$0xff]
    %v743 = vld [vmem:[%s6 + $0xc0] sm:$0xff]
    %v744 = vld [vmem:[%s6 + $0xc8] sm:$0xff]
    %746 = vset.pattern.permute.xlu0 0
    %747 = vperm.xlu0 %746, %v719
    %v748 = vpop.permute.xlu0 %747
    %751 = vset.pattern.permute.xlu0 0
    %752 = vperm.xlu0 %751, %v720
    %v753 = vpop.permute.xlu0 %752
    %756 = vset.pattern.permute.xlu0 0
    %757 = vperm.xlu0 %756, %v721
    %v758 = vpop.permute.xlu0 %757
    %761 = vset.pattern.permute.xlu0 0
    %762 = vperm.xlu0 %761, %v722
    %v763 = vpop.permute.xlu0 %762
    %766 = vset.pattern.permute.xlu0 0
    %767 = vperm.xlu0 %766, %v723
    %v768 = vpop.permute.xlu0 %767
    %771 = vset.pattern.permute.xlu0 0
    %772 = vperm.xlu0 %771, %v724
    %v773 = vpop.permute.xlu0 %772
    %776 = vset.pattern.permute.xlu0 0
    %777 = vperm.xlu0 %776, %v725
    %v778 = vpop.permute.xlu0 %777
    %781 = vset.pattern.permute.xlu0 0
    %782 = vperm.xlu0 %781, %v726
    %v783 = vpop.permute.xlu0 %782
    %786 = vset.pattern.permute.xlu0 0
    %787 = vperm.xlu0 %786, %v727
    %v788 = vpop.permute.xlu0 %787
    %791 = vset.pattern.permute.xlu0 0
    %792 = vperm.xlu0 %791, %v728
    %v793 = vpop.permute.xlu0 %792
    %796 = vset.pattern.permute.xlu0 0
    %797 = vperm.xlu0 %796, %v729
    %v798 = vpop.permute.xlu0 %797
    %801 = vset.pattern.permute.xlu0 0
    %802 = vperm.xlu0 %801, %v730
    %v803 = vpop.permute.xlu0 %802
    %806 = vset.pattern.permute.xlu0 0
    %807 = vperm.xlu0 %806, %v731
    %v808 = vpop.permute.xlu0 %807
    %811 = vset.pattern.permute.xlu0 0
    %812 = vperm.xlu0 %811, %v732
    %v813 = vpop.permute.xlu0 %812
    %816 = vset.pattern.permute.xlu0 0
    %817 = vperm.xlu0 %816, %v733
    %v818 = vpop.permute.xlu0 %817
    %821 = vset.pattern.permute.xlu0 0
    %822 = vperm.xlu0 %821, %v734
    %v823 = vpop.permute.xlu0 %822
    %826 = vset.pattern.permute.xlu0 0
    %827 = vperm.xlu0 %826, %v735
    %v828 = vpop.permute.xlu0 %827
    %831 = vset.pattern.permute.xlu0 0
    %832 = vperm.xlu0 %831, %v736
    %v833 = vpop.permute.xlu0 %832
    %836 = vset.pattern.permute.xlu0 0
    %837 = vperm.xlu0 %836, %v737
    %v838 = vpop.permute.xlu0 %837
    %841 = vset.pattern.permute.xlu0 0
    %842 = vperm.xlu0 %841, %v738
    %v843 = vpop.permute.xlu0 %842
    %846 = vset.pattern.permute.xlu0 0
    %847 = vperm.xlu0 %846, %v739
    %v848 = vpop.permute.xlu0 %847
    %851 = vset.pattern.permute.xlu0 0
    %852 = vperm.xlu0 %851, %v740
    %v853 = vpop.permute.xlu0 %852
    %856 = vset.pattern.permute.xlu0 0
    %857 = vperm.xlu0 %856, %v741
    %v858 = vpop.permute.xlu0 %857
    %861 = vset.pattern.permute.xlu0 0
    %862 = vperm.xlu0 %861, %v742
    %v863 = vpop.permute.xlu0 %862
    %866 = vset.pattern.permute.xlu0 0
    %867 = vperm.xlu0 %866, %v743
    %v868 = vpop.permute.xlu0 %867
    %871 = vset.pattern.permute.xlu0 0
    %872 = vperm.xlu0 %871, %v744
    %v873 = vpop.permute.xlu0 %872
    %v875 = vmul.f32 %v667, %v748
    %v876 = vmul.f32 %v668, %v748
    %v877 = vmul.f32 %v669, %v753
    %v878 = vmul.f32 %v670, %v753
    %v879 = vmul.f32 %v671, %v758
    %v880 = vmul.f32 %v672, %v758
    %v881 = vmul.f32 %v673, %v763
    %v882 = vmul.f32 %v674, %v763
    %v883 = vmul.f32 %v675, %v768
    %v884 = vmul.f32 %v676, %v768
    %v885 = vmul.f32 %v677, %v773
    %v886 = vmul.f32 %v678, %v773
    %v887 = vmul.f32 %v679, %v778
    %v888 = vmul.f32 %v680, %v778
    %v889 = vmul.f32 %v681, %v783
    %v890 = vmul.f32 %v682, %v783
    %v891 = vmul.f32 %v683, %v788
    %v892 = vmul.f32 %v684, %v788
    %v893 = vmul.f32 %v685, %v793
    %v894 = vmul.f32 %v686, %v793
    %v895 = vmul.f32 %v687, %v798
    %v896 = vmul.f32 %v688, %v798
    %v897 = vmul.f32 %v689, %v803
    %v898 = vmul.f32 %v690, %v803
    %v899 = vmul.f32 %v691, %v808
    %v900 = vmul.f32 %v692, %v808
    %v901 = vmul.f32 %v693, %v813
    %v902 = vmul.f32 %v694, %v813
    %v903 = vmul.f32 %v695, %v818
    %v904 = vmul.f32 %v696, %v818
    %v905 = vmul.f32 %v697, %v823
    %v906 = vmul.f32 %v698, %v823
    %v907 = vmul.f32 %v699, %v828
    %v908 = vmul.f32 %v700, %v828
    %v909 = vmul.f32 %v701, %v833
    %v910 = vmul.f32 %v702, %v833
    %v911 = vmul.f32 %v703, %v838
    %v912 = vmul.f32 %v704, %v838
    %v913 = vmul.f32 %v705, %v843
    %v914 = vmul.f32 %v706, %v843
    %v915 = vmul.f32 %v707, %v848
    %v916 = vmul.f32 %v708, %v848
    %v917 = vmul.f32 %v709, %v853
    %v918 = vmul.f32 %v710, %v853
    %v919 = vmul.f32 %v711, %v858
    %v920 = vmul.f32 %v712, %v858
    %v921 = vmul.f32 %v713, %v863
    %v922 = vmul.f32 %v714, %v863
    %v923 = vmul.f32 %v715, %v868
    %v924 = vmul.f32 %v716, %v868
    %v925 = vmul.f32 %v717, %v873
    %v926 = vmul.f32 %v718, %v873
    %v927 = vadd.f32 %v875, %v877
    %v928 = vadd.f32 %v927, %v879
    %v929 = vadd.f32 %v928, %v881
    %v930 = vadd.f32 %v929, %v883
    %v931 = vadd.f32 %v930, %v885
    %v932 = vadd.f32 %v931, %v887
    %v933 = vadd.f32 %v932, %v889
    %v934 = vadd.f32 %v933, %v891
    %v935 = vadd.f32 %v934, %v893
    %v936 = vadd.f32 %v935, %v895
    %v937 = vadd.f32 %v936, %v897
    %v938 = vadd.f32 %v937, %v899
    %v939 = vadd.f32 %v938, %v901
    %v940 = vadd.f32 %v939, %v903
    %v941 = vadd.f32 %v940, %v905
    %v942 = vadd.f32 %v941, %v907
    %v943 = vadd.f32 %v942, %v909
    %v944 = vadd.f32 %v943, %v911
    %v945 = vadd.f32 %v944, %v913
    %v946 = vadd.f32 %v945, %v915
    %v947 = vadd.f32 %v946, %v917
    %v948 = vadd.f32 %v947, %v919
    %v949 = vadd.f32 %v948, %v921
    %v950 = vadd.f32 %v949, %v923
    %v951 = vadd.f32 %v950, %v925
    %v952 = vrot.slane %v951, 4
    %v953 = vadd.f32 %v951, %v952
    %v954 = vrot.slane %v953, 2
    %v955 = vadd.f32 %v953, %v954
    %v956 = vrot.slane %v955, 1
    %v957 = vadd.f32 %v955, %v956
    %v958 = vadd.f32 %v876, %v878
    %v959 = vadd.f32 %v958, %v880
    %v960 = vadd.f32 %v959, %v882
    %v961 = vadd.f32 %v960, %v884
    %v962 = vadd.f32 %v961, %v886
    %v963 = vadd.f32 %v962, %v888
    %v964 = vadd.f32 %v963, %v890
    %v965 = vadd.f32 %v964, %v892
    %v966 = vadd.f32 %v965, %v894
    %v967 = vadd.f32 %v966, %v896
    %v968 = vadd.f32 %v967, %v898
    %v969 = vadd.f32 %v968, %v900
    %v970 = vadd.f32 %v969, %v902
    %v971 = vadd.f32 %v970, %v904
    %v972 = vadd.f32 %v971, %v906
    %v973 = vadd.f32 %v972, %v908
    %v974 = vadd.f32 %v973, %v910
    %v975 = vadd.f32 %v974, %v912
    %v976 = vadd.f32 %v975, %v914
    %v977 = vadd.f32 %v976, %v916
    %v978 = vadd.f32 %v977, %v918
    %v979 = vadd.f32 %v978, %v920
    %v980 = vadd.f32 %v979, %v922
    %v981 = vadd.f32 %v980, %v924
    %v982 = vadd.f32 %v981, %v926
    %v983 = vrot.slane %v982, 4
    %v984 = vadd.f32 %v982, %v983
    %v985 = vrot.slane %v984, 2
    %v986 = vadd.f32 %v984, %v985
    %v987 = vrot.slane %v986, 1
    %v988 = vadd.f32 %v986, %v987
    %v989 = vld [vmem:[%s0] sm:$0x3]
    %s990 = sld [smem:[#allocation2]]
    %v991 = vstv %s990
    %v992 = vmul.f32 %v989, %v991
    %v994 = vlaneseq
    %v995 = vshrl.u32 %v994, 7
    %v996 = vsub.s32 0, %v995
    %v997 = vrot.slane %v992, %v996
    %v998 = vlaneseq
    %v999 = vshrl.u32 %v998, 7
    %v1000 = vsub.s32 1, %v999
    %v1001 = vrot.slane %v992, %v1000
    %v1004 = vadd.f32 %v957, %v997
    %v1005 = vadd.f32 %v988, %v1001
    %s1006 = sld [smem:[#allocation2 + $0x1]]
    %v1007 = vstv %s1006
    %v1008 = vadd.f32 %v1004, %v1007
    %v1009 = vadd.f32 %v1005, %v1007
    %v1012 = vcombine.low %v1008, %v1009
    %v1014 = vunpack.c.l.s4 1966171168
    %v1015 = vunpack.c.0.s8 %v1014
    %v1016 = vlaneseq
    %v1017 = vshrl.u32 %v1016, 7
    %v1018 = vsub.s32 %v1015, %v1017
    %v1019 = vrot.slane %v1012, %v1018
    %v1021 = vunpack.c.l.s4 1966171168
    %v1022 = vunpack.c.0.s8 %v1021
    %v1023 = vlaneseq
    %v1024 = vshrl.u32 %v1023, 7
    %v1025 = vsub.s32 %v1022, %v1024
    %v1026 = vrot.slane %v1019, %v1025
    %v1028 = vlaneseq
    %vm1029 = vcmp.ge.s32.totalorder %v1028, 0
    %vm1030 = vcmp.lt.s32.totalorder %v1028, 256
    %vm1031 = vmand %vm1029, %vm1030
    %1032 = vst.msk [vmem:[#allocation5] sm:$0x3] %vm1031, %v1026
    // Predicated region
    $region38: #{tpu_custom_call.1} parent=1 // pred_check
      _
    $region39: #{tpu_custom_call.1} parent=1 // pred_check_branch
      %1034 = sbr.rel (0) target = $region41
    $region40: #{tpu_custom_call.1} parent=1 // pred_region
      %s1036 = ssub.s32 32, 32
      %1037 = vsyncadd [#allocation3], %s1036
      %s1039 = sshll.u32 [#allocation5], 4
      %s1040 = int_to_ptr.vmem [resolvable:$true] %s1039
      %1042 = dma.vmem_to_hbm [thread:$0]  %s1040, 32, %s8, [#allocation3]
    $region41: #{tpu_custom_call.1} parent=1 // pred_fallthru
      _
    // Predicated region
    $region42: #{tpu_custom_call.1} parent=1 // pred_check
      _
    $region43: #{tpu_custom_call.1} parent=1 // pred_check_branch
      %1044 = sbr.rel (0) target = $region45
    $region44: #{tpu_custom_call.1} parent=1 // pred_region
      %1045 = dma.done [#allocation3], 32
    $region45: #{tpu_custom_call.1} parent=1 // pred_fallthru
      _
    %1046 = vsyncpa [#allocation3], 1
    %1047 = vsyncpa [#allocation4], 1

</llo_original>
